<compile_context>
chip_gen: v6e
topology: v6e:2x2x1
jax: 0.10.0
libtpu: 0.0.40
codegen_flags: <defaults>
</compile_context>

<pallas_src>
import functools

import jax
import jax.numpy as jnp
from jax import lax
from jax.experimental import pallas as pl
from jax.experimental.pallas import tpu as pltpu


LANES = 128
SUBLANES = 8
SUB = 16            # rows per inner fori_loop step (legal for f32 and bf16 tiles)
GRANULE = 16        # block_rows granularity (bf16 min tile is (16, 128))


def _default_block_rows() -> int:
    """Generation-aware max rows per grid step (multiple of GRANULE)."""
    try:
        kind = jax.devices()[0].device_kind.lower()
    except Exception:  # pragma: no cover - defensive
        return 1024
    # v7x: 3.2 TB/s HBM -> bigger blocks to amortize the per-step overhead.
    return 2048 if "7" in kind else 1024


def _fold_rows(x):
    """(SUB, 128) -> (8, 128) with pure VALU adds (no cross-lane XLU work)."""
    return x.reshape(SUB // SUBLANES, SUBLANES, LANES).sum(axis=0)


# --------------------------------------------------------------------------
# Fast path: H*W % 128 == 0  -> free view (B, 3, rows, 128), dense lane tiles.
# --------------------------------------------------------------------------
def _color_loss_kernel(pred_ref, targ_ref, suml_ref, sumab_ref, *,
                       rows_total: int, block_rows: int,
                       chunks_per_split: int, n_chunks: int):
    """One grid step: accumulate squared LAB-diff partial sums for one chunk."""
    c = pl.program_id(1)                      # core-split index ("parallel")
    j = pl.program_id(2)                      # row-chunk index (reduction axis)
    global_chunk = c * chunks_per_split + j   # unclamped chunk id

    @pl.when(j == 0)
    def _():
        suml_ref[...] = jnp.zeros_like(suml_ref)
        sumab_ref[...] = jnp.zeros_like(sumab_ref)

    n_sub = block_rows // SUB

    def make_body(masked: bool):
        def body(i, carry):
            acc_l, acc_ab = carry
            r0 = pl.multiple_of(i * SUB, SUB)

            def chan(ref, ch):
                return ref[0, ch, pl.ds(r0, SUB), :].astype(jnp.float32)

            dr = chan(pred_ref, 0) - chan(targ_ref, 0)
            dg = chan(pred_ref, 1) - chan(targ_ref, 1)
            db = chan(pred_ref, 2) - chan(targ_ref, 2)

            # RGB->LAB is linear, so lab(pred) - lab(target) == lab(pred - target).
            d_l = 0.299 * dr + 0.587 * dg + 0.114 * db
            u = dr - dg               # == 2 * d_a   (0.5 scale hoisted to wrapper)
            v = dr + dg - 2.0 * db    # == 2 * d_b
            sq_l = d_l * d_l
            sq_ab = u * u + v * v

            if masked:
                # Tail / overhanging chunk: rows past the array hold whatever
                # padding Pallas supplies (possibly NaN garbage).  The select
                # discards it *after* the squares, which is safe because
                # jnp.where is an elementwise select (no NaN propagation).
                row = lax.broadcasted_iota(jnp.int32, (SUB, LANES), 0)
                valid = (global_chunk * block_rows + i * SUB + row) < rows_total
                sq_l = jnp.where(valid, sq_l, 0.0)
                sq_ab = jnp.where(valid, sq_ab, 0.0)

            return acc_l + _fold_rows(sq_l), acc_ab + _fold_rows(sq_ab)
        return body

    def run(masked: bool, unroll: int):
        zero = jnp.zeros((SUBLANES, LANES), jnp.float32)
        acc_l, acc_ab = lax.fori_loop(0, n_sub, make_body(masked), (zero, zero),
                                      unroll=unroll)
        # Single VMEM-resident accumulator update per grid step.
        suml_ref[0, 0] += acc_l
        sumab_ref[0, 0] += acc_ab

    # Only the (at most one) ragged chunk pays the masking cost.
    is_full = (global_chunk + 1) * block_rows <= rows_total

    @pl.when(is_full)
    def _():
        run(masked=False, unroll=min(8, n_sub))

    @pl.when(jnp.logical_not(is_full))
    def _():
        run(masked=True, unroll=1)


def _color_loss_flat(pred, target):
    """Returns (sum d_l^2, sum (2 d_a)^2 + (2 d_b)^2) over all pixels."""
    B, _, H, W = pred.shape
    hw = H * W
    rows = hw // LANES

    # Free views only (NCHW is contiguous): no transpose, no extra HBM copy.
    pred4 = pred.reshape(B, 3, rows, LANES)
    targ4 = target.reshape(B, 3, rows, LANES)

    block_max = _default_block_rows()
    # Core-split axis keeps both v7x TensorCores busy when B == 1.
    n_split = 2 if (B == 1 and rows > GRANULE) else 1
    # Balanced chunking: equal 16-granular chunks rather than block_max + tail.
    t = max(n_split, pl.cdiv(rows, block_max))
    t = pl.cdiv(t, n_split) * n_split
    block_rows = pl.cdiv(pl.cdiv(rows, t), GRANULE) * GRANULE
    n_chunks = pl.cdiv(rows, block_rows)
    cps = pl.cdiv(n_chunks, n_split)          # chunks per core-split slot

    kernel = functools.partial(_color_loss_kernel,
                               rows_total=rows, block_rows=block_rows,
                               chunks_per_split=cps, n_chunks=n_chunks)

    def in_map(b, c, j):
        # Clamp so a (rare) surplus slot never issues a fully out-of-bounds
        # block DMA; its contribution is zeroed by the in-kernel row mask.
        chunk = jnp.minimum(c * cps + j, n_chunks - 1)
        return (b, 0, chunk, 0)

    in_spec = pl.BlockSpec((1, 3, block_rows, LANES), in_map)
    out_spec = pl.BlockSpec((1, 1, SUBLANES, LANES), lambda b, c, j: (b, c, 0, 0))
    out_struct = jax.ShapeDtypeStruct((B, n_split, SUBLANES, LANES), jnp.float32)

    suml, sumab = pl.pallas_call(
        kernel,
        out_shape=(out_struct, out_struct),
        grid_spec=pltpu.PrefetchScalarGridSpec(
            num_scalar_prefetch=0,
            grid=(B, n_split, cps),            # reduction axis (row chunks) last
            in_specs=[in_spec, in_spec],
            out_specs=[out_spec, out_spec],
        ),
        compiler_params=pltpu.CompilerParams(
            dimension_semantics=("parallel", "parallel", "arbitrary"),
            # 2048-row f32 blocks: 2 inputs x 2 buffers x 3 MiB = 12 MiB.
            vmem_limit_bytes=32 * 1024 * 1024,
        ),
    )(pred4, targ4)

    return jnp.sum(suml, dtype=jnp.float32), jnp.sum(sumab, dtype=jnp.float32)


# --------------------------------------------------------------------------
# Fallback: H*W % 128 != 0 -> no pad / no extra HBM copy; native (B,3,H,W)
# blocks with full-extent W (always legal) and in-kernel row masking.
# --------------------------------------------------------------------------
def _color_loss_kernel_4d(pred_ref, targ_ref, suml_ref, sumab_ref, *,
                          h_total: int, h_block: int):
    j = pl.program_id(1)

    @pl.when(j == 0)
    def _():
        suml_ref[...] = jnp.zeros_like(suml_ref)
        sumab_ref[...] = jnp.zeros_like(sumab_ref)

    def chan(ref, ch):
        return ref[0, ch].astype(jnp.float32)       # (h_block, W)

    dr = chan(pred_ref, 0) - chan(targ_ref, 0)
    dg = chan(pred_ref, 1) - chan(targ_ref, 1)
    db = chan(pred_ref, 2) - chan(targ_ref, 2)
    d_l = 0.299 * dr + 0.587 * dg + 0.114 * db
    u = dr - dg
    v = dr + dg - 2.0 * db

    row = lax.broadcasted_iota(jnp.int32, d_l.shape, 0)
    valid = (j * h_block + row) < h_total           # mask overhanging rows
    sq_l = jnp.where(valid, d_l * d_l, 0.0)
    sq_ab = jnp.where(valid, u * u + v * v, 0.0)

    suml_ref[0, 0] += sq_l.sum(axis=0)
    sumab_ref[0, 0] += sq_ab.sum(axis=0)


def _color_loss_4d(pred, target):
    B, _, H, W = pred.shape
    # Cap per-input block at ~2 MiB of (lane-padded) VMEM.
    bytes_per_row = 3 * (pl.cdiv(W, LANES) * LANES) * 4
    max_rows = max(GRANULE, (2 * 1024 * 1024) // bytes_per_row)
    h_block = min(pl.cdiv(H, GRANULE) * GRANULE,
                  max(GRANULE, (max_rows // GRANULE) * GRANULE))
    n_chunks = pl.cdiv(H, h_block)

    kernel = functools.partial(_color_loss_kernel_4d, h_total=H, h_block=h_block)

    in_spec = pl.BlockSpec((1, 3, h_block, W), lambda b, j: (b, 0, j, 0))
    out_spec = pl.BlockSpec((1, 1, W), lambda b, j: (b, 0, 0))
    out_struct = jax.ShapeDtypeStruct((B, 1, W), jnp.float32)

    suml, sumab = pl.pallas_call(
        kernel,
        out_shape=(out_struct, out_struct),
        grid_spec=pltpu.PrefetchScalarGridSpec(
            num_scalar_prefetch=0,
            grid=(B, n_chunks),
            in_specs=[in_spec, in_spec],
            out_specs=[out_spec, out_spec],
        ),
        compiler_params=pltpu.CompilerParams(
            dimension_semantics=("parallel", "arbitrary"),
            vmem_limit_bytes=32 * 1024 * 1024,
        ),
    )(pred, target)

    return jnp.sum(suml, dtype=jnp.float32), jnp.sum(sumab, dtype=jnp.float32)


# --------------------------------------------------------------------------
# Public wrapper
# --------------------------------------------------------------------------
def color_loss(pred: jax.Array, target: jax.Array, weight: float = 1.0) -> jax.Array:
    """pred, target: (B, 3, H, W) RGB (f32 or bf16). Returns scalar float32 loss."""
    assert pred.shape == target.shape and pred.shape[1] == 3
    B, _, H, W = pred.shape
    hw = H * W
    n = B * hw

    if hw % LANES == 0:
        sum_l, sum_ab4 = _color_loss_flat(pred, target)
    else:
        # Rare odd-H*W case: no padded HBM copy, just a less lane-dense layout.
        sum_l, sum_ab4 = _color_loss_4d(pred, target)

    # sum_ab4 accumulated (2*d_a)^2 + (2*d_b)^2 -> scale by 0.25 here (hoisted).
    l_loss = sum_l / jnp.float32(n)
    ab_loss = 0.25 * sum_ab4 / jnp.float32(2 * n)
    return jnp.float32(weight) * (l_loss + 2.0 * ab_loss)


def _reference_color_loss(pred, target, weight=1.0):
    """Pure-JAX reference matching the simplified module semantics."""
    def rgb_to_lab(x):
        r, g, b = x[:, 0:1], x[:, 1:2], x[:, 2:3]
        l = 0.299 * r + 0.587 * g + 0.114 * b
        a = 0.5 * (r - g)
        b_comp = 0.5 * (g + r - 2.0 * b)
        return jnp.concatenate([l, a, b_comp], axis=1)

    p = rgb_to_lab(pred.astype(jnp.float32))
    t = rgb_to_lab(target.astype(jnp.float32))
    l_loss = jnp.mean((p[:, 0:1] - t[:, 0:1]) ** 2)
    ab_loss = jnp.mean((p[:, 1:3] - t[:, 1:3]) ** 2)
    return weight * (l_loss + 2.0 * ab_loss)


if __name__ == "__main__":
    key = jax.random.PRNGKey(0)
    k1, k2, k3, k4, k5, k6 = jax.random.split(key, 6)

    # 1) Small case (B=2, 3, 16x16): exercises the masked overhanging chunk
    #    (rows=2 valid inside a block_rows=16 tile).
    pred = jax.random.uniform(k1, (2, 3, 16, 16), dtype=jnp.float32)
    target = jax.random.uniform(k2, (2, 3, 16, 16), dtype=jnp.float32)
    loss = jax.block_until_ready(color_loss(pred, target, weight=1.0))
    ref = jax.block_until_ready(_reference_color_loss(pred, target, weight=1.0))
    assert jnp.allclose(loss, ref, rtol=2e-5, atol=1e-6), (loss, ref)

    # 2) B=1, 256x384: balanced chunking (768 rows -> 2 x 384) + v7x core-split
    #    axis, all-unmasked fast path.
    pred2 = jax.random.uniform(k3, (1, 3, 256, 384), dtype=jnp.float32)
    target2 = jax.random.uniform(k4, (1, 3, 256, 384), dtype=jnp.float32)
    loss2 = jax.block_until_ready(color_loss(pred2, target2, weight=0.5))
    ref2 = jax.block_until_ready(_reference_color_loss(pred2, target2, weight=0.5))
    assert jnp.allclose(loss2, ref2, rtol=2e-5, atol=1e-6), (loss2, ref2)

    # 3) Odd H*W (12x20, hw=240 not divisible by 128): exercises the no-pad
    #    fallback kernel with row masking.
    pred3 = jax.random.uniform(k5, (2, 3, 12, 20), dtype=jnp.float32)
    target3 = jax.random.uniform(k6, (2, 3, 12, 20), dtype=jnp.float32)
    loss3 = jax.block_until_ready(color_loss(pred3, target3, weight=2.0))
    ref3 = jax.block_until_ready(_reference_color_loss(pred3, target3, weight=2.0))
    assert jnp.allclose(loss3, ref3, rtol=2e-5, atol=1e-6), (loss3, ref3)

    # 4) bf16 inputs (halved HBM traffic path); kernel upcasts in-register.
    pred4 = pred2[:, :, :128, :128].astype(jnp.bfloat16)
    target4 = target2[:, :, :128, :128].astype(jnp.bfloat16)
    loss4 = jax.block_until_ready(color_loss(pred4, target4, weight=1.0))
    ref4 = jax.block_until_ready(_reference_color_loss(pred4, target4, weight=1.0))
    assert jnp.allclose(loss4, ref4, rtol=2e-5, atol=1e-6), (loss4, ref4)

    print("KERNEL_OK")
</pallas_src>

<mosaic_0001>
module attributes {stable_mosaic.version = 11 : i64} {
  func.func @_color_loss_kernel(%arg0: i32, %arg1: i32, %arg2: i32, %arg3: memref<1x3x16x128xf32, #tpu.memory_space<vmem>>, %arg4: memref<1x3x16x128xf32, #tpu.memory_space<vmem>>, %arg5: memref<1x1x8x128xf32, #tpu.memory_space<vmem>>, %arg6: memref<1x1x8x128xf32, #tpu.memory_space<vmem>>) attributes {dimension_semantics = [#tpu.dimension_semantics<parallel>, #tpu.dimension_semantics<parallel>, #tpu.dimension_semantics<arbitrary>], iteration_bounds = array<i64: 2, 1, 1>, scalar_prefetch = 0 : i64, scratch_operands = 0 : i64, tpu.core_type = #tpu.core_type<tc>, window_params = [{transform_indices = @transform_0, window_bounds = array<i64: 1, 3, 16, 128>}, {transform_indices = @transform_1, window_bounds = array<i64: 1, 3, 16, 128>}, {transform_indices = @transform_2, window_bounds = array<i64: 1, 1, 8, 128>}, {transform_indices = @transform_3, window_bounds = array<i64: 1, 1, 8, 128>}]} {
    %c1_i32 = arith.constant 1 : i32
    %0 = arith.muli %arg1, %c1_i32 : i32
    %1 = arith.addi %0, %arg2 : i32
    %c0_i32 = arith.constant 0 : i32
    %2 = arith.cmpi eq, %arg2, %c0_i32 : i32
    %3 = arith.extui %2 : i1 to i32
    %c0_i32_0 = arith.constant 0 : i32
    %4 = arith.cmpi ne, %3, %c0_i32_0 : i32
    scf.if %4 {
      %cst = arith.constant 0.000000e+00 : f32
      %13 = vector.broadcast %cst : f32 to vector<1x1x8x128xf32>
      %c0 = arith.constant 0 : index
      %c0_4 = arith.constant 0 : index
      %c0_5 = arith.constant 0 : index
      %c0_6 = arith.constant 0 : index
      %14 = vector.load %arg5[%c0, %c0_4, %c0_5, %c0_6] : memref<1x1x8x128xf32, #tpu.memory_space<vmem>>, vector<1x1x8x128xf32>
      tpu.vector_store %arg5[%c0, %c0_4, %c0_5, %c0_6], %13 {strides = array<i32>} : memref<1x1x8x128xf32, #tpu.memory_space<vmem>>, vector<1x1x8x128xf32>,
      %cst_7 = arith.constant 0.000000e+00 : f32
      %15 = vector.broadcast %cst_7 : f32 to vector<1x1x8x128xf32>
      %c0_8 = arith.constant 0 : index
      %c0_9 = arith.constant 0 : index
      %c0_10 = arith.constant 0 : index
      %c0_11 = arith.constant 0 : index
      %16 = vector.load %arg6[%c0_8, %c0_9, %c0_10, %c0_11] : memref<1x1x8x128xf32, #tpu.memory_space<vmem>>, vector<1x1x8x128xf32>
      tpu.vector_store %arg6[%c0_8, %c0_9, %c0_10, %c0_11], %15 {strides = array<i32>} : memref<1x1x8x128xf32, #tpu.memory_space<vmem>>, vector<1x1x8x128xf32>,
    } else {
    }
    %c1_i32_1 = arith.constant 1 : i32
    %5 = arith.addi %1, %c1_i32_1 : i32
    %c16_i32 = arith.constant 16 : i32
    %6 = arith.muli %5, %c16_i32 : i32
    %c2_i32 = arith.constant 2 : i32
    %7 = arith.cmpi sle, %6, %c2_i32 : i32
    %8 = arith.extui %7 : i1 to i32
    %c0_i32_2 = arith.constant 0 : i32
    %9 = arith.cmpi ne, %8, %c0_i32_2 : i32
    scf.if %9 {
      %cst = arith.constant 0.000000e+00 : f32
      %13 = vector.broadcast %cst : f32 to vector<8x128xf32>
      %c0_i32_4 = arith.constant 0 : i32
      %c16_i32_5 = arith.constant 16 : i32
      %14 = arith.muli %c0_i32_4, %c16_i32_5 : i32
      %15 = tpu.assume_multiple %14, 16 : i32
      %c0 = arith.constant 0 : index
      %c0_6 = arith.constant 0 : index
      %16 = arith.index_cast %15 : i32 to index
      %c0_7 = arith.constant 0 : index
      %17 = vector.load %arg3[%c0, %c0_6, %16, %c0_7] : memref<1x3x16x128xf32, #tpu.memory_space<vmem>>, vector<1x1x16x128xf32>
      %18 = vector.shape_cast %17 : vector<1x1x16x128xf32> to vector<16x128xf32>
      %c0_8 = arith.constant 0 : index
      %c0_9 = arith.constant 0 : index
      %19 = arith.index_cast %15 : i32 to index
      %c0_10 = arith.constant 0 : index
      %20 = vector.load %arg4[%c0_8, %c0_9, %19, %c0_10] : memref<1x3x16x128xf32, #tpu.memory_space<vmem>>, vector<1x1x16x128xf32>
      %21 = vector.shape_cast %20 : vector<1x1x16x128xf32> to vector<16x128xf32>
      %22 = arith.subf %18, %21 : vector<16x128xf32>
      %c0_11 = arith.constant 0 : index
      %c1 = arith.constant 1 : index
      %23 = arith.index_cast %15 : i32 to index
      %c0_12 = arith.constant 0 : index
      %24 = vector.load %arg3[%c0_11, %c1, %23, %c0_12] : memref<1x3x16x128xf32, #tpu.memory_space<vmem>>, vector<1x1x16x128xf32>
      %25 = vector.shape_cast %24 : vector<1x1x16x128xf32> to vector<16x128xf32>
      %c0_13 = arith.constant 0 : index
      %c1_14 = arith.constant 1 : index
      %26 = arith.index_cast %15 : i32 to index
      %c0_15 = arith.constant 0 : index
      %27 = vector.load %arg4[%c0_13, %c1_14, %26, %c0_15] : memref<1x3x16x128xf32, #tpu.memory_space<vmem>>, vector<1x1x16x128xf32>
      %28 = vector.shape_cast %27 : vector<1x1x16x128xf32> to vector<16x128xf32>
      %29 = arith.subf %25, %28 : vector<16x128xf32>
      %c0_16 = arith.constant 0 : index
      %c2 = arith.constant 2 : index
      %30 = arith.index_cast %15 : i32 to index
      %c0_17 = arith.constant 0 : index
      %31 = vector.load %arg3[%c0_16, %c2, %30, %c0_17] : memref<1x3x16x128xf32, #tpu.memory_space<vmem>>, vector<1x1x16x128xf32>
      %32 = vector.shape_cast %31 : vector<1x1x16x128xf32> to vector<16x128xf32>
      %c0_18 = arith.constant 0 : index
      %c2_19 = arith.constant 2 : index
      %33 = arith.index_cast %15 : i32 to index
      %c0_20 = arith.constant 0 : index
      %34 = vector.load %arg4[%c0_18, %c2_19, %33, %c0_20] : memref<1x3x16x128xf32, #tpu.memory_space<vmem>>, vector<1x1x16x128xf32>
      %35 = vector.shape_cast %34 : vector<1x1x16x128xf32> to vector<16x128xf32>
      %36 = arith.subf %32, %35 : vector<16x128xf32>
      %cst_21 = arith.constant 2.990000e-01 : f32
      %37 = vector.broadcast %cst_21 : f32 to vector<16x128xf32>
      %38 = arith.mulf %37, %22 : vector<16x128xf32>
      %cst_22 = arith.constant 5.870000e-01 : f32
      %39 = vector.broadcast %cst_22 : f32 to vector<16x128xf32>
      %40 = arith.mulf %39, %29 : vector<16x128xf32>
      %41 = arith.addf %38, %40 : vector<16x128xf32>
      %cst_23 = arith.constant 1.140000e-01 : f32
      %42 = vector.broadcast %cst_23 : f32 to vector<16x128xf32>
      %43 = arith.mulf %42, %36 : vector<16x128xf32>
      %44 = arith.addf %41, %43 : vector<16x128xf32>
      %45 = arith.subf %22, %29 : vector<16x128xf32>
      %46 = arith.addf %22, %29 : vector<16x128xf32>
      %cst_24 = arith.constant 2.000000e+00 : f32
      %47 = vector.broadcast %cst_24 : f32 to vector<16x128xf32>
      %48 = arith.mulf %47, %36 : vector<16x128xf32>
      %49 = arith.subf %46, %48 : vector<16x128xf32>
      %50 = arith.mulf %44, %44 : vector<16x128xf32>
      %51 = arith.mulf %45, %45 : vector<16x128xf32>
      %52 = arith.mulf %49, %49 : vector<16x128xf32>
      %53 = arith.addf %51, %52 : vector<16x128xf32>
      %54 = vector.shape_cast %50 : vector<16x128xf32> to vector<2x8x128xf32>
      %cst_25 = arith.constant dense<0.000000e+00> : vector<8x128xf32>
      %55 = vector.multi_reduction <add>, %54, %cst_25 [0] : vector<2x8x128xf32> to vector<8x128xf32>
      %56 = arith.addf %13, %55 : vector<8x128xf32>
      %57 = vector.shape_cast %53 : vector<16x128xf32> to vector<2x8x128xf32>
      %cst_26 = arith.constant dense<0.000000e+00> : vector<8x128xf32>
      %58 = vector.multi_reduction <add>, %57, %cst_26 [0] : vector<2x8x128xf32> to vector<8x128xf32>
      %59 = arith.addf %13, %58 : vector<8x128xf32>
      %c1_i32_27 = arith.constant 1 : i32
      %c0_28 = arith.constant 0 : index
      %c0_29 = arith.constant 0 : index
      %c0_30 = arith.constant 0 : index
      %c0_31 = arith.constant 0 : index
      %60 = vector.load %arg5[%c0_28, %c0_29, %c0_30, %c0_31] : memref<1x1x8x128xf32, #tpu.memory_space<vmem>>, vector<1x1x8x128xf32>
      %61 = vector.shape_cast %60 : vector<1x1x8x128xf32> to vector<8x128xf32>
      %62 = arith.addf %61, %56 : vector<8x128xf32>
      %c0_32 = arith.constant 0 : index
      %c0_33 = arith.constant 0 : index
      %c0_34 = arith.constant 0 : index
      %c0_35 = arith.constant 0 : index
      %63 = vector.load %arg5[%c0_32, %c0_33, %c0_34, %c0_35] : memref<1x1x8x128xf32, #tpu.memory_space<vmem>>, vector<1x1x8x128xf32>
      %64 = vector.shape_cast %63 : vector<1x1x8x128xf32> to vector<8x128xf32>
      %65 = vector.shape_cast %62 : vector<8x128xf32> to vector<1x1x8x128xf32>
      tpu.vector_store %arg5[%c0_32, %c0_33, %c0_34, %c0_35], %65 {strides = array<i32>} : memref<1x1x8x128xf32, #tpu.memory_space<vmem>>, vector<1x1x8x128xf32>,
      %c0_36 = arith.constant 0 : index
      %c0_37 = arith.constant 0 : index
      %c0_38 = arith.constant 0 : index
      %c0_39 = arith.constant 0 : index
      %66 = vector.load %arg6[%c0_36, %c0_37, %c0_38, %c0_39] : memref<1x1x8x128xf32, #tpu.memory_space<vmem>>, vector<1x1x8x128xf32>
      %67 = vector.shape_cast %66 : vector<1x1x8x128xf32> to vector<8x128xf32>
      %68 = arith.addf %67, %59 : vector<8x128xf32>
      %c0_40 = arith.constant 0 : index
      %c0_41 = arith.constant 0 : index
      %c0_42 = arith.constant 0 : index
      %c0_43 = arith.constant 0 : index
      %69 = vector.load %arg6[%c0_40, %c0_41, %c0_42, %c0_43] : memref<1x1x8x128xf32, #tpu.memory_space<vmem>>, vector<1x1x8x128xf32>
      %70 = vector.shape_cast %69 : vector<1x1x8x128xf32> to vector<8x128xf32>
      %71 = vector.shape_cast %68 : vector<8x128xf32> to vector<1x1x8x128xf32>
      tpu.vector_store %arg6[%c0_40, %c0_41, %c0_42, %c0_43], %71 {strides = array<i32>} : memref<1x1x8x128xf32, #tpu.memory_space<vmem>>, vector<1x1x8x128xf32>,
    } else {
    }
    %true = arith.constant true
    %10 = arith.xori %7, %true : i1
    %11 = arith.extui %10 : i1 to i32
    %c0_i32_3 = arith.constant 0 : i32
    %12 = arith.cmpi ne, %11, %c0_i32_3 : i32
    scf.if %12 {
      %cst = arith.constant 0.000000e+00 : f32
      %13 = vector.broadcast %cst : f32 to vector<8x128xf32>
      %c0_i32_4 = arith.constant 0 : i32
      %c16_i32_5 = arith.constant 16 : i32
      %14 = arith.muli %c0_i32_4, %c16_i32_5 : i32
      %15 = tpu.assume_multiple %14, 16 : i32
      %c0 = arith.constant 0 : index
      %c0_6 = arith.constant 0 : index
      %16 = arith.index_cast %15 : i32 to index
      %c0_7 = arith.constant 0 : index
      %17 = vector.load %arg3[%c0, %c0_6, %16, %c0_7] : memref<1x3x16x128xf32, #tpu.memory_space<vmem>>, vector<1x1x16x128xf32>
      %18 = vector.shape_cast %17 : vector<1x1x16x128xf32> to vector<16x128xf32>
      %c0_8 = arith.constant 0 : index
      %c0_9 = arith.constant 0 : index
      %19 = arith.index_cast %15 : i32 to index
      %c0_10 = arith.constant 0 : index
      %20 = vector.load %arg4[%c0_8, %c0_9, %19, %c0_10] : memref<1x3x16x128xf32, #tpu.memory_space<vmem>>, vector<1x1x16x128xf32>
      %21 = vector.shape_cast %20 : vector<1x1x16x128xf32> to vector<16x128xf32>
      %22 = arith.subf %18, %21 : vector<16x128xf32>
      %c0_11 = arith.constant 0 : index
      %c1 = arith.constant 1 : index
      %23 = arith.index_cast %15 : i32 to index
      %c0_12 = arith.constant 0 : index
      %24 = vector.load %arg3[%c0_11, %c1, %23, %c0_12] : memref<1x3x16x128xf32, #tpu.memory_space<vmem>>, vector<1x1x16x128xf32>
      %25 = vector.shape_cast %24 : vector<1x1x16x128xf32> to vector<16x128xf32>
      %c0_13 = arith.constant 0 : index
      %c1_14 = arith.constant 1 : index
      %26 = arith.index_cast %15 : i32 to index
      %c0_15 = arith.constant 0 : index
      %27 = vector.load %arg4[%c0_13, %c1_14, %26, %c0_15] : memref<1x3x16x128xf32, #tpu.memory_space<vmem>>, vector<1x1x16x128xf32>
      %28 = vector.shape_cast %27 : vector<1x1x16x128xf32> to vector<16x128xf32>
      %29 = arith.subf %25, %28 : vector<16x128xf32>
      %c0_16 = arith.constant 0 : index
      %c2 = arith.constant 2 : index
      %30 = arith.index_cast %15 : i32 to index
      %c0_17 = arith.constant 0 : index
      %31 = vector.load %arg3[%c0_16, %c2, %30, %c0_17] : memref<1x3x16x128xf32, #tpu.memory_space<vmem>>, vector<1x1x16x128xf32>
      %32 = vector.shape_cast %31 : vector<1x1x16x128xf32> to vector<16x128xf32>
      %c0_18 = arith.constant 0 : index
      %c2_19 = arith.constant 2 : index
      %33 = arith.index_cast %15 : i32 to index
      %c0_20 = arith.constant 0 : index
      %34 = vector.load %arg4[%c0_18, %c2_19, %33, %c0_20] : memref<1x3x16x128xf32, #tpu.memory_space<vmem>>, vector<1x1x16x128xf32>
      %35 = vector.shape_cast %34 : vector<1x1x16x128xf32> to vector<16x128xf32>
      %36 = arith.subf %32, %35 : vector<16x128xf32>
      %cst_21 = arith.constant 2.990000e-01 : f32
      %37 = vector.broadcast %cst_21 : f32 to vector<16x128xf32>
      %38 = arith.mulf %37, %22 : vector<16x128xf32>
      %cst_22 = arith.constant 5.870000e-01 : f32
      %39 = vector.broadcast %cst_22 : f32 to vector<16x128xf32>
      %40 = arith.mulf %39, %29 : vector<16x128xf32>
      %41 = arith.addf %38, %40 : vector<16x128xf32>
      %cst_23 = arith.constant 1.140000e-01 : f32
      %42 = vector.broadcast %cst_23 : f32 to vector<16x128xf32>
      %43 = arith.mulf %42, %36 : vector<16x128xf32>
      %44 = arith.addf %41, %43 : vector<16x128xf32>
      %45 = arith.subf %22, %29 : vector<16x128xf32>
      %46 = arith.addf %22, %29 : vector<16x128xf32>
      %cst_24 = arith.constant 2.000000e+00 : f32
      %47 = vector.broadcast %cst_24 : f32 to vector<16x128xf32>
      %48 = arith.mulf %47, %36 : vector<16x128xf32>
      %49 = arith.subf %46, %48 : vector<16x128xf32>
      %50 = arith.mulf %44, %44 : vector<16x128xf32>
      %51 = arith.mulf %45, %45 : vector<16x128xf32>
      %52 = arith.mulf %49, %49 : vector<16x128xf32>
      %53 = arith.addf %51, %52 : vector<16x128xf32>
      %54 = tpu.iota {dimensions = array<i32: 0>} : vector<16x128xi32>
      %c16_i32_25 = arith.constant 16 : i32
      %55 = arith.muli %1, %c16_i32_25 : i32
      %c16_i32_26 = arith.constant 16 : i32
      %56 = arith.muli %c0_i32_4, %c16_i32_26 : i32
      %57 = arith.addi %55, %56 : i32
      %58 = vector.broadcast %57 : i32 to vector<16x128xi32>
      %59 = arith.addi %58, %54 : vector<16x128xi32>
      %c2_i32_27 = arith.constant 2 : i32
      %60 = vector.broadcast %c2_i32_27 : i32 to vector<16x128xi32>
      %61 = arith.cmpi slt, %59, %60 : vector<16x128xi32>
      %cst_28 = arith.constant 0.000000e+00 : f32
      %62 = vector.broadcast %cst_28 : f32 to vector<16x128xf32>
      %63 = arith.select %61, %50, %62 : vector<16x128xi1>, vector<16x128xf32>
      %cst_29 = arith.constant 0.000000e+00 : f32
      %64 = vector.broadcast %cst_29 : f32 to vector<16x128xf32>
      %65 = arith.select %61, %53, %64 : vector<16x128xi1>, vector<16x128xf32>
      %66 = vector.shape_cast %63 : vector<16x128xf32> to vector<2x8x128xf32>
      %cst_30 = arith.constant dense<0.000000e+00> : vector<8x128xf32>
      %67 = vector.multi_reduction <add>, %66, %cst_30 [0] : vector<2x8x128xf32> to vector<8x128xf32>
      %68 = arith.addf %13, %67 : vector<8x128xf32>
      %69 = vector.shape_cast %65 : vector<16x128xf32> to vector<2x8x128xf32>
      %cst_31 = arith.constant dense<0.000000e+00> : vector<8x128xf32>
      %70 = vector.multi_reduction <add>, %69, %cst_31 [0] : vector<2x8x128xf32> to vector<8x128xf32>
      %71 = arith.addf %13, %70 : vector<8x128xf32>
      %c1_i32_32 = arith.constant 1 : i32
      %c0_33 = arith.constant 0 : index
      %c0_34 = arith.constant 0 : index
      %c0_35 = arith.constant 0 : index
      %c0_36 = arith.constant 0 : index
      %72 = vector.load %arg5[%c0_33, %c0_34, %c0_35, %c0_36] : memref<1x1x8x128xf32, #tpu.memory_space<vmem>>, vector<1x1x8x128xf32>
      %73 = vector.shape_cast %72 : vector<1x1x8x128xf32> to vector<8x128xf32>
      %74 = arith.addf %73, %68 : vector<8x128xf32>
      %c0_37 = arith.constant 0 : index
      %c0_38 = arith.constant 0 : index
      %c0_39 = arith.constant 0 : index
      %c0_40 = arith.constant 0 : index
      %75 = vector.load %arg5[%c0_37, %c0_38, %c0_39, %c0_40] : memref<1x1x8x128xf32, #tpu.memory_space<vmem>>, vector<1x1x8x128xf32>
      %76 = vector.shape_cast %75 : vector<1x1x8x128xf32> to vector<8x128xf32>
      %77 = vector.shape_cast %74 : vector<8x128xf32> to vector<1x1x8x128xf32>
      tpu.vector_store %arg5[%c0_37, %c0_38, %c0_39, %c0_40], %77 {strides = array<i32>} : memref<1x1x8x128xf32, #tpu.memory_space<vmem>>, vector<1x1x8x128xf32>,
      %c0_41 = arith.constant 0 : index
      %c0_42 = arith.constant 0 : index
      %c0_43 = arith.constant 0 : index
      %c0_44 = arith.constant 0 : index
      %78 = vector.load %arg6[%c0_41, %c0_42, %c0_43, %c0_44] : memref<1x1x8x128xf32, #tpu.memory_space<vmem>>, vector<1x1x8x128xf32>
      %79 = vector.shape_cast %78 : vector<1x1x8x128xf32> to vector<8x128xf32>
      %80 = arith.addf %79, %71 : vector<8x128xf32>
      %c0_45 = arith.constant 0 : index
      %c0_46 = arith.constant 0 : index
      %c0_47 = arith.constant 0 : index
      %c0_48 = arith.constant 0 : index
      %81 = vector.load %arg6[%c0_45, %c0_46, %c0_47, %c0_48] : memref<1x1x8x128xf32, #tpu.memory_space<vmem>>, vector<1x1x8x128xf32>
      %82 = vector.shape_cast %81 : vector<1x1x8x128xf32> to vector<8x128xf32>
      %83 = vector.shape_cast %80 : vector<8x128xf32> to vector<1x1x8x128xf32>
      tpu.vector_store %arg6[%c0_45, %c0_46, %c0_47, %c0_48], %83 {strides = array<i32>} : memref<1x1x8x128xf32, #tpu.memory_space<vmem>>, vector<1x1x8x128xf32>,
    } else {
    }
    return
  }
  func.func @transform_0(%arg0: i32, %arg1: i32, %arg2: i32) -> (i32, i32, i32, i32) {
    %c1_i32 = arith.constant 1 : i32
    %0 = arith.muli %arg1, %c1_i32 : i32
    %1 = arith.addi %0, %arg2 : i32
    %c0_i32 = arith.constant 0 : i32
    %2 = arith.minsi %1, %c0_i32 : i32
    %c0_i32_0 = arith.constant 0 : i32
    %c0_i32_1 = arith.constant 0 : i32
    %c0_i32_2 = arith.constant 0 : i32
    return %arg0, %c0_i32_0, %2, %c0_i32_1 : i32, i32, i32, i32
  }
  func.func @transform_1(%arg0: i32, %arg1: i32, %arg2: i32) -> (i32, i32, i32, i32) {
    %c1_i32 = arith.constant 1 : i32
    %0 = arith.muli %arg1, %c1_i32 : i32
    %1 = arith.addi %0, %arg2 : i32
    %c0_i32 = arith.constant 0 : i32
    %2 = arith.minsi %1, %c0_i32 : i32
    %c0_i32_0 = arith.constant 0 : i32
    %c0_i32_1 = arith.constant 0 : i32
    %c0_i32_2 = arith.constant 0 : i32
    return %arg0, %c0_i32_0, %2, %c0_i32_1 : i32, i32, i32, i32
  }
  func.func @transform_2(%arg0: i32, %arg1: i32, %arg2: i32) -> (i32, i32, i32, i32) {
    %c0_i32 = arith.constant 0 : i32
    %c0_i32_0 = arith.constant 0 : i32
    %c0_i32_1 = arith.constant 0 : i32
    return %arg0, %arg1, %c0_i32, %c0_i32_0 : i32, i32, i32, i32
  }
  func.func @transform_3(%arg0: i32, %arg1: i32, %arg2: i32) -> (i32, i32, i32, i32) {
    %c0_i32 = arith.constant 0 : i32
    %c0_i32_0 = arith.constant 0 : i32
    %c0_i32_1 = arith.constant 0 : i32
    return %arg0, %arg1, %c0_i32, %c0_i32_0 : i32, i32, i32, i32
  }
}

</mosaic_0001>

<llo_original>
// kernel: tpu_custom_call.1
$region0: #{tpu_custom_call.1}
  #allocation0 [shape = 'u32[]', space=smem, size = 0x4, offset = 0x4, fixed_abs, tag = 'smem constant byte address 0x4 - core index']
  #allocation1 [shape = 'u32[144,128]{1,0:T(1,128)}', space=vmem, size = 0x12000, scoped, tag = 'internal scratch']
  #allocation10 [shape = 's32[]', space=sflag, size = 0x4, offset = 0, fixed_abs, tag = 'sflag constant byte address 0x0 - dummy sync flag']
  #allocation12 [shape = 's32[]', space=sflag, size = 0x4, offset = 0, fixed_abs, tag = 'sflag constant byte address 0x0 - dummy sync flag']
  %s0 = inlined_call_operand.hbm [shape: f32[2,3,2,128], index: 0, kind: input, shape index: {}]
  %s1 = inlined_call_operand.hbm [shape: f32[2,3,2,128], index: 1, kind: input, shape index: {}]
  %s2 = inlined_call_operand.hbm [shape: f32[2,1,8,128], index: 2, kind: output, shape index: {0}]
  %s3 = inlined_call_operand.hbm [shape: f32[2,1,8,128], index: 3, kind: output, shape index: {1}]
  %4 = xla_tuple %s2, %s3
  %s5 = sld [smem:[#allocation0]]
  $region69: #{tpu_custom_call.1} parent=0
    _
  %s7 = ssub.s32 1, %s5
  %s8 = scalar_select 0, %s7, %s5
  $region1: #{tpu_custom_call.1} parent=0
    #allocation2 [shape = 'u8[49152]{0}', space=vmem, size = 0xc000, scoped, tag = 'input window, operand 0']
    #allocation3 [shape = 's32[2]{0}', space=sflag, size = 0x8, scoped, tag = 'scoped memory for tpu_custom_call.1']
    #allocation4 [shape = 's32[2]{0}', space=sflag, size = 0x8, scoped, tag = 'scoped memory for tpu_custom_call.1']
    #allocation5 [shape = 'u8[49152]{0}', space=vmem, size = 0xc000, scoped, tag = 'input window, operand 1']
    #allocation6 [shape = 's32[2]{0}', space=sflag, size = 0x8, scoped, tag = 'scoped memory for tpu_custom_call.1']
    #allocation7 [shape = 'u8[8192]{0}', space=vmem, size = 0x2000, scoped, tag = 'output window, operand 0']
    #allocation8 [shape = 'u8[8192]{0}', space=vmem, size = 0x2000, scoped, tag = 'output window, operand 1']
    #allocation9 [shape = 's32[2]{0}', space=sflag, size = 0x8, scoped, tag = 'scoped memory for tpu_custom_call.1']
    %9 = vsyncpa [#allocation3], 0
    %s10 = scalar_lea.sflag [#allocation3], 1
    %11 = vsyncpa %s10, 0
    %12 = vsyncpa [#allocation6], 0
    %s13 = scalar_lea.sflag [#allocation6], 1
    %14 = vsyncpa %s13, 0
    %15 = vsyncpa [#allocation4], 0
    %s16 = scalar_lea.sflag [#allocation4], 1
    %17 = vsyncpa %s16, 0
    %18 = vsyncpa [#allocation9], 0
    %s19 = scalar_lea.sflag [#allocation9], 1
    %20 = vsyncpa %s19, 0
    loop: start=0, step=1, limit=4
    $region2: #{tpu_custom_call.1} parent=1 // loop_pre_header
      _
    $region3: #{tpu_custom_call.1} parent=1 // loop_header
      %s22 = sphi 0, %s26
      %p23 = scmp.ge.s32.totalorder %s22, 4
      %s29 = sphi 0, %s48
      %s30 = sphi 0, %s44
      %s31 = sphi 0, %s40
      %s32 = sphi 0, %s29
      %s33 = sphi 0, %s30
      %s34 = sphi 0, %s31
      %s35 = sphi 0, %s32
      %s36 = sphi 0, %s33
      %s37 = sphi 0, %s34
      %s59 = sphi 0, %s61
      %s62 = sphi 0, %s59
      %s63 = sphi 0, %s62
      %s79 = sphi 0, %s63
      %s93 = sphi 0, %s95
      %s96 = sphi 0, %s93
      %s97 = sphi 0, %s96
      %s113 = sphi 0, %s97
      %s121 = sphi 0, %s123
      %s124 = sphi 0, %s121
      %s125 = sphi 0, %s124
      %s141 = sphi 0, %s125
      %s149 = sphi 0, %s151
      %s152 = sphi 0, %s149
      %s153 = sphi 0, %s152
      %s169 = sphi 0, %s153
    $region4: #{tpu_custom_call.1} parent=1 // loop_header_branch
      %25 = sbr.rel (%p23) target = $region8
    $region5: #{tpu_custom_call.1} parent=1 // loop_body
      %s27 = ssub.s32 %s22, 1
      %s28 = ssub.s32 %s22, 2
      %s38 = sadd.s32 1, %s31
      %p39 = scmp.ge.s32.totalorder %s38, 1
      %s40 = scalar_select %p39, 0, %s38
      %s41 = sadd.s32 1, %s30
      %s42 = scalar_select %p39, %s41, %s30
      %p43 = scmp.ge.s32.totalorder %s42, 1
      %s44 = scalar_select %p43, 0, %s42
      %s45 = sadd.s32 1, %s29
      %s46 = scalar_select %p43, %s45, %s29
      %p47 = scmp.ge.s32.totalorder %s46, 2
      %s48 = scalar_select %p47, 0, %s46
      %s49 = sadd.s32 %s30, %s31
      %p50 = scmp.lt.s32.totalorder %s49, 0
      %s51 = scalar_select %p50, %s49, 0
      %s52 = sadd.s32 %s44, %s40
      %p53 = scmp.lt.s32.totalorder %s52, 0
      %s54 = scalar_select %p53, %s52, 0
      %s55 = ssub.s32 %s29, %s48
      %s56 = ssub.s32 %s51, %s54
      %s57 = sor.u32 %s55, %s56
      %p58 = scmp.eq.s32.totalorder %s57, 0
      %s60 = sadd.s32 %s59, 1
      %s61 = scalar_select %p58, %s59, %s60
      %p64 = pneg %p58
      %p65 = scmp.eq.s32.totalorder %s22, 1
      %p66 = por %p64, %p65
      %p67 = scmp.ne.s32.totalorder %s59, %s62
      %p68 = scmp.eq.s32.totalorder %s22, 0
      %p69 = por %p67, %p68
      %p70 = scmp.ne.s32.totalorder %s59, %s62
      %p71 = scmp.eq.s32.totalorder %s27, 1
      %p72 = por %p70, %p71
      %p73 = scmp.ne.s32.totalorder %s62, %s63
      %p74 = scmp.eq.s32.totalorder %s27, 0
      %p75 = por %p73, %p74
      %p76 = scmp.ne.s32.totalorder %s62, %s63
      %p77 = scmp.eq.s32.totalorder %s28, 1
      %p78 = por %p76, %p77
      %p80 = scmp.ne.s32.totalorder %s63, %s79
      %p81 = scmp.eq.s32.totalorder %s28, 0
      %p82 = por %p80, %p81
      %s83 = sadd.s32 %s30, %s31
      %p84 = scmp.lt.s32.totalorder %s83, 0
      %s85 = scalar_select %p84, %s83, 0
      %s86 = sadd.s32 %s44, %s40
      %p87 = scmp.lt.s32.totalorder %s86, 0
      %s88 = scalar_select %p87, %s86, 0
      %s89 = ssub.s32 %s29, %s48
      %s90 = ssub.s32 %s85, %s88
      %s91 = sor.u32 %s89, %s90
      %p92 = scmp.eq.s32.totalorder %s91, 0
      %s94 = sadd.s32 %s93, 1
      %s95 = scalar_select %p92, %s93, %s94
      %p98 = pneg %p92
      %p99 = scmp.eq.s32.totalorder %s22, 1
      %p100 = por %p98, %p99
      %p101 = scmp.ne.s32.totalorder %s93, %s96
      %p102 = scmp.eq.s32.totalorder %s22, 0
      %p103 = por %p101, %p102
      %p104 = scmp.ne.s32.totalorder %s93, %s96
      %p105 = scmp.eq.s32.totalorder %s27, 1
      %p106 = por %p104, %p105
      %p107 = scmp.ne.s32.totalorder %s96, %s97
      %p108 = scmp.eq.s32.totalorder %s27, 0
      %p109 = por %p107, %p108
      %p110 = scmp.ne.s32.totalorder %s96, %s97
      %p111 = scmp.eq.s32.totalorder %s28, 1
      %p112 = por %p110, %p111
      %p114 = scmp.ne.s32.totalorder %s97, %s113
      %p115 = scmp.eq.s32.totalorder %s28, 0
      %p116 = por %p114, %p115
      %s117 = ssub.s32 %s29, %s48
      %s118 = ssub.s32 %s30, %s44
      %s119 = sor.u32 %s117, %s118
      %p120 = scmp.eq.s32.totalorder %s119, 0
      %s122 = sadd.s32 %s121, 1
      %s123 = scalar_select %p120, %s121, %s122
      %p126 = pneg %p120
      %p127 = scmp.eq.s32.totalorder %s22, 1
      %p128 = por %p126, %p127
      %p129 = scmp.ne.s32.totalorder %s121, %s124
      %p130 = scmp.eq.s32.totalorder %s22, 0
      %p131 = por %p129, %p130
      %p132 = scmp.ne.s32.totalorder %s121, %s124
      %p133 = scmp.eq.s32.totalorder %s27, 1
      %p134 = por %p132, %p133
      %p135 = scmp.ne.s32.totalorder %s124, %s125
      %p136 = scmp.eq.s32.totalorder %s27, 0
      %p137 = por %p135, %p136
      %p138 = scmp.ne.s32.totalorder %s124, %s125
      %p139 = scmp.eq.s32.totalorder %s28, 1
      %p140 = por %p138, %p139
      %p142 = scmp.ne.s32.totalorder %s125, %s141
      %p143 = scmp.eq.s32.totalorder %s28, 0
      %p144 = por %p142, %p143
      %s145 = ssub.s32 %s29, %s48
      %s146 = ssub.s32 %s30, %s44
      %s147 = sor.u32 %s145, %s146
      %p148 = scmp.eq.s32.totalorder %s147, 0
      %s150 = sadd.s32 %s149, 1
      %s151 = scalar_select %p148, %s149, %s150
      %p154 = pneg %p148
      %p155 = scmp.eq.s32.totalorder %s22, 1
      %p156 = por %p154, %p155
      %p157 = scmp.ne.s32.totalorder %s149, %s152
      %p158 = scmp.eq.s32.totalorder %s22, 0
      %p159 = por %p157, %p158
      %p160 = scmp.ne.s32.totalorder %s149, %s152
      %p161 = scmp.eq.s32.totalorder %s27, 1
      %p162 = por %p160, %p161
      %p163 = scmp.ne.s32.totalorder %s152, %s153
      %p164 = scmp.eq.s32.totalorder %s27, 0
      %p165 = por %p163, %p164
      %p166 = scmp.ne.s32.totalorder %s152, %s153
      %p167 = scmp.eq.s32.totalorder %s28, 1
      %p168 = por %p166, %p167
      %p170 = scmp.ne.s32.totalorder %s153, %s169
      %p171 = scmp.eq.s32.totalorder %s28, 0
      %p172 = por %p170, %p171
      %p173 = scmp.le.s32.totalorder 1, %s22
      %p174 = scmp.lt.s32.totalorder %s22, 3
      %p175 = pnand %p173, %p174
      %p176 = pneg %p175
      // Predicated region
      $region9: #{tpu_custom_call.1} parent=5 // pred_check
        _
      $region10: #{tpu_custom_call.1} parent=5 // pred_check_branch
        %178 = sbr.rel (%p175) target = $region12
      $region11: #{tpu_custom_call.1} parent=5 // pred_region
        %s179 = ssub.s32 %s22, 1
      $region12: #{tpu_custom_call.1} parent=5 // pred_fallthru
        _
      %p180 = scmp.lt.s32.totalorder %s22, 2
      // Predicated region
      $region13: #{tpu_custom_call.1} parent=5 // pred_check
        %p181 = pneg %p180
      $region14: #{tpu_custom_call.1} parent=5 // pred_check_branch
        %183 = sbr.rel (%p181) target = $region16
      $region15: #{tpu_custom_call.1} parent=5 // pred_region
        // Predicated region
        $region17: #{tpu_custom_call.1} parent=15 // pred_check
          %p184 = pneg %p69
        $region18: #{tpu_custom_call.1} parent=15 // pred_check_branch
          %186 = sbr.rel (%p184) target = $region20
        $region19: #{tpu_custom_call.1} parent=15 // pred_region
          #allocation11 [shape = 'u32[6]{0}', space=smem, size = 0x18, scoped, tag = 'DMA stride descriptor']
          %s187 = sand.u32 %s59, 1
          %s188 = scalar_lea.sflag [#allocation3], %s187
          %s189 = sand.u32 %s59, 1
          %s190 = smul.addr %s189, 48
          %s191 = scalar_lea.vmem [#allocation2], %s190
          %s192 = sadd.s32 %s30, %s31
          %p193 = scmp.lt.s32.totalorder %s192, 0
          %s194 = scalar_select %p193, %s192, 0
          %s195 = smul.u32 8, %s194
          %s196 = ssub.s32 1, %s195
          %s197 = smul.u32 96, %s196
          %s199 = ssub.s32 768, %s197
          %200 = vsyncadd %s188, %s199
          %p201 = scmp.ne.s32.totalorder 0, %s197
          %s202 = smul.addr %s29, 3
          %s203 = sadd.s32 %s195, %s202
          %s204 = smul.addr %s203, 32
          %s205 = scalar_lea.hbm %s0, %s204
          %s206 = smul.u32 2, %s196
          %s207 = smul.u32 %s206, 3
          %s209 = sshll.u32 1, 14
          %s210 = sxor.u32 4294967295, %s209
          %s212 = sld [smem:[#allocation0]]
          %s213 = sadd.s32 2, %s212
          %s215 = sshll.u32 7, 26
          %s216 = sxor.u32 4294967295, %s215
          %s217 = sand.u32 0, %s216
          %s218 = sshll.u32 %s213, 26
          %s219 = sor.u32 %s217, %s218
          %s220 = sshll.u32 %s191, 4
          %s221 = int_to_ptr.vmem [resolvable:$true] %s220
          %s222 = sshll.u32 %s207, 4
          %227 = sst [smem:[#allocation11]] 32
          %s228 = scalar_lea.smem [#allocation11], 1
          %229 = sst [smem:[%s228]] 256
          %s230 = scalar_lea.smem [#allocation11], 2
          %231 = sst [smem:[%s230]] %s196
          %s232 = scalar_lea.smem [#allocation11], 3
          %233 = sst [smem:[%s232]] 32
          %s234 = scalar_lea.smem [#allocation11], 4
          %235 = sst [smem:[%s234]] 32
          %s236 = scalar_lea.smem [#allocation11], 5
          %237 = sst [smem:[%s236]] 2
          %239 = dma.general (%p201), %s205, %s222, %s221, %s188, 131072, [#allocation11], %s219, 0
        $region20: #{tpu_custom_call.1} parent=15 // pred_fallthru
          _
        // Predicated region
        $region21: #{tpu_custom_call.1} parent=15 // pred_check
          %p240 = pneg %p103
        $region22: #{tpu_custom_call.1} parent=15 // pred_check_branch
          %242 = sbr.rel (%p240) target = $region24
        $region23: #{tpu_custom_call.1} parent=15 // pred_region
          #allocation13 [shape = 'u32[6]{0}', space=smem, size = 0x18, scoped, tag = 'DMA stride descriptor']
          %s243 = sand.u32 %s93, 1
          %s244 = scalar_lea.sflag [#allocation6], %s243
          %s245 = sand.u32 %s93, 1
          %s246 = smul.addr %s245, 48
          %s247 = scalar_lea.vmem [#allocation5], %s246
          %s248 = sadd.s32 %s30, %s31
          %p249 = scmp.lt.s32.totalorder %s248, 0
          %s250 = scalar_select %p249, %s248, 0
          %s251 = smul.u32 8, %s250
          %s252 = ssub.s32 1, %s251
          %s253 = smul.u32 96, %s252
          %s255 = ssub.s32 768, %s253
          %256 = vsyncadd %s244, %s255
          %p257 = scmp.ne.s32.totalorder 0, %s253
          %s258 = smul.addr %s29, 3
          %s259 = sadd.s32 %s251, %s258
          %s260 = smul.addr %s259, 32
          %s261 = scalar_lea.hbm %s1, %s260
          %s262 = smul.u32 2, %s252
          %s263 = smul.u32 %s262, 3
          %s265 = sshll.u32 1, 14
          %s266 = sxor.u32 4294967295, %s265
          %s268 = sld [smem:[#allocation0]]
          %s269 = sadd.s32 2, %s268
          %s271 = sshll.u32 7, 26
          %s272 = sxor.u32 4294967295, %s271
          %s273 = sand.u32 0, %s272
          %s274 = sshll.u32 %s269, 26
          %s275 = sor.u32 %s273, %s274
          %s276 = sshll.u32 %s247, 4
          %s277 = int_to_ptr.vmem [resolvable:$true] %s276
          %s278 = sshll.u32 %s263, 4
          %283 = sst [smem:[#allocation13]] 32
          %s284 = scalar_lea.smem [#allocation13], 1
          %285 = sst [smem:[%s284]] 256
          %s286 = scalar_lea.smem [#allocation13], 2
          %287 = sst [smem:[%s286]] %s252
          %s288 = scalar_lea.smem [#allocation13], 3
          %289 = sst [smem:[%s288]] 32
          %s290 = scalar_lea.smem [#allocation13], 4
          %291 = sst [smem:[%s290]] 32
          %s292 = scalar_lea.smem [#allocation13], 5
          %293 = sst [smem:[%s292]] 2
          %295 = dma.general (%p257), %s261, %s278, %s277, %s244, 131072, [#allocation13], %s275, 0
        $region24: #{tpu_custom_call.1} parent=15 // pred_fallthru
          _
      $region16: #{tpu_custom_call.1} parent=5 // pred_fallthru
        _
      %p296 = scmp.le.s32.totalorder 1, %s22
      %p297 = scmp.lt.s32.totalorder %s22, 3
      %p298 = pnand %p296, %p297
      %p299 = pneg %p298
      // Predicated region
      $region25: #{tpu_custom_call.1} parent=5 // pred_check
        _
      $region26: #{tpu_custom_call.1} parent=5 // pred_check_branch
        %301 = sbr.rel (%p298) target = $region28
      $region27: #{tpu_custom_call.1} parent=5 // pred_region
        %s302 = ssub.s32 %s22, 1
        %s303 = sand.u32 %s62, 1
        %s304 = scalar_lea.sflag [#allocation3], %s303
        %s305 = sand.u32 %s62, 1
        %s306 = smul.addr %s305, 48
        %s307 = scalar_lea.vmem [#allocation2], %s306
        // Predicated region
        $region29: #{tpu_custom_call.1} parent=27 // pred_check
          %p308 = pneg %p75
        $region30: #{tpu_custom_call.1} parent=27 // pred_check_branch
          %310 = sbr.rel (%p308) target = $region32
        $region31: #{tpu_custom_call.1} parent=27 // pred_region
          %311 = dma.done %s304, 768
        $region32: #{tpu_custom_call.1} parent=27 // pred_fallthru
          _
        %s312 = sand.u32 %s96, 1
        %s313 = scalar_lea.sflag [#allocation6], %s312
        %s314 = sand.u32 %s96, 1
        %s315 = smul.addr %s314, 48
        %s316 = scalar_lea.vmem [#allocation5], %s315
        // Predicated region
        $region33: #{tpu_custom_call.1} parent=27 // pred_check
          %p317 = pneg %p109
        $region34: #{tpu_custom_call.1} parent=27 // pred_check_branch
          %319 = sbr.rel (%p317) target = $region36
        $region35: #{tpu_custom_call.1} parent=27 // pred_region
          %320 = dma.done %s313, 768
        $region36: #{tpu_custom_call.1} parent=27 // pred_fallthru
          _
        %s321 = sand.u32 %s62, 1
        %s322 = scalar_lea.sflag [#allocation3], %s321
        %s323 = sand.u32 %s62, 1
        %s324 = smul.addr %s323, 48
        %s325 = scalar_lea.vmem [#allocation2], %s324
        %p326 = pneg %p75
        %p327 = pneg %p72
        %s328 = sand.u32 %s96, 1
        %s329 = scalar_lea.sflag [#allocation6], %s328
        %s330 = sand.u32 %s96, 1
        %s331 = smul.addr %s330, 48
        %s332 = scalar_lea.vmem [#allocation5], %s331
        %p333 = pneg %p109
        %p334 = pneg %p106
        %p335 = pneg %p137
        %p336 = pneg %p134
        %s337 = sand.u32 %s124, 1
        %s338 = scalar_lea.sflag [#allocation4], %s337
        %s339 = sand.u32 %s124, 1
        %s340 = smul.addr %s339, 8
        %s341 = scalar_lea.vmem [#allocation7], %s340
        %p342 = pneg %p165
        %p343 = pneg %p162
        %s344 = sand.u32 %s152, 1
        %s345 = scalar_lea.sflag [#allocation9], %s344
        %s346 = sand.u32 %s152, 1
        %s347 = smul.addr %s346, 8
        %s348 = scalar_lea.vmem [#allocation8], %s347
        %s349 = sadd.s32 %s33, %s34
        %p350 = scmp.lt.s32.totalorder %s349, 0
        %s351 = scalar_select %p350, %s349, 0
        %s352 = smul.u32 8, %s351
        %s353 = ssub.s32 1, %s352
        %s354 = smul.u32 96, %s353
        %s355 = sadd.s32 %s33, %s34
        %p356 = scmp.lt.s32.totalorder %s355, 0
        %s357 = scalar_select %p356, %s355, 0
        %s358 = smul.u32 8, %s357
        %s359 = ssub.s32 1, %s358
        %s360 = smul.u32 96, %s359
        %s361 = sadd.s32 %s33, %s34
        %p362 = scmp.eq.s32.totalorder %s34, 0
        // Predicated region
        $region37: #{tpu_custom_call.1} parent=27 // pred_check
          %p363 = pneg %p362
        $region38: #{tpu_custom_call.1} parent=27 // pred_check_branch
          %365 = sbr.rel (%p363) target = $region40
        $region39: #{tpu_custom_call.1} parent=27 // pred_region
          %366 = vst [vmem:[%s341] sm:$0xff] 0.0
          %367 = vst [vmem:[%s348] sm:$0xff] 0.0
        $region40: #{tpu_custom_call.1} parent=27 // pred_fallthru
          _
        %s368 = sadd.s32 %s361, 1
        %s369 = smul.u32 %s368, 16
        %p370 = scmp.le.s32.totalorder %s369, 2
        // Predicated region
        $region41: #{tpu_custom_call.1} parent=27 // pred_check
          %p371 = pneg %p370
        $region42: #{tpu_custom_call.1} parent=27 // pred_check_branch
          %373 = sbr.rel (%p371) target = $region44
        $region43: #{tpu_custom_call.1} parent=27 // pred_region
          %v374 = vld [vmem:[%s307] sm:$0xff]
          %v375 = vld [vmem:[%s307 + $0x8] sm:$0xff]
          %v376 = vld [vmem:[%s316] sm:$0xff]
          %v377 = vld [vmem:[%s316 + $0x8] sm:$0xff]
          %v378 = vsub.f32 %v374, %v376
          %v379 = vsub.f32 %v375, %v377
          %s380 = sadd.s32 0, 16
          %s381 = scalar_lea.vmem %s307, %s380 [#allocation2]
          %v382 = vld [vmem:[%s381] sm:$0xff]
          %v383 = vld [vmem:[%s381 + $0x8] sm:$0xff]
          %s384 = scalar_lea.vmem %s316, %s380 [#allocation5]
          %v385 = vld [vmem:[%s384] sm:$0xff]
          %v386 = vld [vmem:[%s384 + $0x8] sm:$0xff]
          %v387 = vsub.f32 %v382, %v385
          %v388 = vsub.f32 %v383, %v386
          %s389 = sadd.s32 0, 32
          %s390 = scalar_lea.vmem %s307, %s389 [#allocation2]
          %v391 = vld [vmem:[%s390] sm:$0xff]
          %v392 = vld [vmem:[%s390 + $0x8] sm:$0xff]
          %s393 = scalar_lea.vmem %s316, %s389 [#allocation5]
          %v394 = vld [vmem:[%s393] sm:$0xff]
          %v395 = vld [vmem:[%s393 + $0x8] sm:$0xff]
          %v396 = vsub.f32 %v391, %v394
          %v397 = vsub.f32 %v392, %v395
          %v398 = vmul.f32 %v378, 0.299
          %v399 = vmul.f32 %v379, 0.299
          %v400 = vmul.f32 %v387, 0.587
          %v401 = vmul.f32 %v388, 0.587
          %v402 = vadd.f32 %v398, %v400
          %v403 = vadd.f32 %v399, %v401
          %v404 = vmul.f32 %v396, 0.114
          %v405 = vmul.f32 %v397, 0.114
          %v406 = vadd.f32 %v402, %v404
          %v407 = vadd.f32 %v403, %v405
          %v408 = vsub.f32 %v378, %v387
          %v409 = vsub.f32 %v379, %v388
          %v410 = vadd.f32 %v378, %v387
          %v411 = vadd.f32 %v379, %v388
          %v412 = vmul.f32 %v396, 2.0
          %v413 = vmul.f32 %v397, 2.0
          %v414 = vsub.f32 %v410, %v412
          %v415 = vsub.f32 %v411, %v413
          %v416 = vmul.f32 %v406, %v406
          %v417 = vmul.f32 %v407, %v407
          %v418 = vmul.f32 %v408, %v408
          %v419 = vmul.f32 %v409, %v409
          %v420 = vmul.f32 %v414, %v414
          %v421 = vmul.f32 %v415, %v415
          %v422 = vadd.f32 %v418, %v420
          %v423 = vadd.f32 %v419, %v421
          %v424 = vadd.f32 %v416, %v417
          %v425 = vadd.f32 %v424, 0.0
          %v426 = vadd.f32 %v422, %v423
          %v427 = vadd.f32 %v426, 0.0
          %v428 = vld [vmem:[%s341] sm:$0xff]
          %v429 = vadd.f32 %v428, %v425
          %430 = vst [vmem:[%s341] sm:$0xff] %v429
          %v431 = vld [vmem:[%s348] sm:$0xff]
          %v432 = vadd.f32 %v431, %v427
          %433 = vst [vmem:[%s348] sm:$0xff] %v432
        $region44: #{tpu_custom_call.1} parent=27 // pred_fallthru
          _
        %p434 = scmp.gt.s32.totalorder %s369, 2
        // Predicated region
        $region45: #{tpu_custom_call.1} parent=27 // pred_check
          %p435 = pneg %p434
        $region46: #{tpu_custom_call.1} parent=27 // pred_check_branch
          %437 = sbr.rel (%p435) target = $region48
        $region47: #{tpu_custom_call.1} parent=27 // pred_region
          %v438 = vld [vmem:[%s307] sm:$0xff]
          %v439 = vld [vmem:[%s307 + $0x8] sm:$0xff]
          %v440 = vld [vmem:[%s316] sm:$0xff]
          %v441 = vld [vmem:[%s316 + $0x8] sm:$0xff]
          %v442 = vsub.f32 %v438, %v440
          %v443 = vsub.f32 %v439, %v441
          %s444 = sadd.s32 0, 16
          %s445 = scalar_lea.vmem %s307, %s444 [#allocation2]
          %v446 = vld [vmem:[%s445] sm:$0xff]
          %v447 = vld [vmem:[%s445 + $0x8] sm:$0xff]
          %s448 = scalar_lea.vmem %s316, %s444 [#allocation5]
          %v449 = vld [vmem:[%s448] sm:$0xff]
          %v450 = vld [vmem:[%s448 + $0x8] sm:$0xff]
          %v451 = vsub.f32 %v446, %v449
          %v452 = vsub.f32 %v447, %v450
          %s453 = sadd.s32 0, 32
          %s454 = scalar_lea.vmem %s307, %s453 [#allocation2]
          %v455 = vld [vmem:[%s454] sm:$0xff]
          %v456 = vld [vmem:[%s454 + $0x8] sm:$0xff]
          %s457 = scalar_lea.vmem %s316, %s453 [#allocation5]
          %v458 = vld [vmem:[%s457] sm:$0xff]
          %v459 = vld [vmem:[%s457 + $0x8] sm:$0xff]
          %v460 = vsub.f32 %v455, %v458
          %v461 = vsub.f32 %v456, %v459
          %v462 = vmul.f32 %v442, 0.299
          %v463 = vmul.f32 %v443, 0.299
          %v464 = vmul.f32 %v451, 0.587
          %v465 = vmul.f32 %v452, 0.587
          %v466 = vadd.f32 %v462, %v464
          %v467 = vadd.f32 %v463, %v465
          %v468 = vmul.f32 %v460, 0.114
          %v469 = vmul.f32 %v461, 0.114
          %v470 = vadd.f32 %v466, %v468
          %v471 = vadd.f32 %v467, %v469
          %v472 = vsub.f32 %v442, %v451
          %v473 = vsub.f32 %v443, %v452
          %v474 = vadd.f32 %v442, %v451
          %v475 = vadd.f32 %v443, %v452
          %v476 = vmul.f32 %v460, 2.0
          %v477 = vmul.f32 %v461, 2.0
          %v478 = vsub.f32 %v474, %v476
          %v479 = vsub.f32 %v475, %v477
          %v480 = vmul.f32 %v470, %v470
          %v481 = vmul.f32 %v471, %v471
          %v482 = vmul.f32 %v472, %v472
          %v483 = vmul.f32 %v473, %v473
          %v484 = vmul.f32 %v478, %v478
          %v485 = vmul.f32 %v479, %v479
          %v486 = vadd.f32 %v482, %v484
          %v487 = vadd.f32 %v483, %v485
          %v488 = vlaneseq
          %v489 = vshrl.u32 %v488, 7
          %v490 = vadd.s32 %v489, 8
          %s491 = smul.u32 %s361, 16
          %v492 = vstv %s491
          %v493 = vadd.s32 %v492, %v489
          %v494 = vadd.s32 %v492, %v490
          %vm495 = vcmp.lt.s32.totalorder %v493, 2
          %vm496 = vcmp.lt.s32.totalorder %v494, 2
          %v497 = vsel %vm495, %v480, 0.0
          %v498 = vsel %vm496, %v481, 0.0
          %v499 = vsel %vm495, %v486, 0.0
          %v500 = vsel %vm496, %v487, 0.0
          %v501 = vadd.f32 %v497, %v498
          %v502 = vadd.f32 %v501, 0.0
          %v503 = vadd.f32 %v499, %v500
          %v504 = vadd.f32 %v503, 0.0
          %v505 = vld [vmem:[%s341] sm:$0xff]
          %v506 = vadd.f32 %v505, %v502
          %507 = vst [vmem:[%s341] sm:$0xff] %v506
          %v508 = vld [vmem:[%s348] sm:$0xff]
          %v509 = vadd.f32 %v508, %v504
          %510 = vst [vmem:[%s348] sm:$0xff] %v509
        $region48: #{tpu_custom_call.1} parent=27 // pred_fallthru
          _
        %s511 = sand.u32 %s124, 1
        %s512 = scalar_lea.sflag [#allocation4], %s511
        %s513 = sand.u32 %s124, 1
        %s514 = smul.addr %s513, 8
        %s515 = scalar_lea.vmem [#allocation7], %s514
        %s516 = sand.u32 %s152, 1
        %s517 = scalar_lea.sflag [#allocation9], %s516
        %s518 = sand.u32 %s152, 1
        %s519 = smul.addr %s518, 8
        %s520 = scalar_lea.vmem [#allocation8], %s519
        // Predicated region
        $region49: #{tpu_custom_call.1} parent=27 // pred_check
          %p521 = pneg %p134
        $region50: #{tpu_custom_call.1} parent=27 // pred_check_branch
          %523 = sbr.rel (%p521) target = $region52
        $region51: #{tpu_custom_call.1} parent=27 // pred_region
          %s525 = ssub.s32 128, 128
          %526 = vsyncadd %s512, %s525
          %s527 = sadd.s32 %s33, %s32
          %s528 = smul.addr %s527, 128
          %s529 = scalar_lea.hbm %s2, %s528
          %s531 = sshll.u32 %s515, 4
          %s532 = int_to_ptr.vmem [resolvable:$true] %s531
          %534 = dma.vmem_to_hbm [thread:$0]  %s532, 128, %s529, %s512
        $region52: #{tpu_custom_call.1} parent=27 // pred_fallthru
          _
        // Predicated region
        $region53: #{tpu_custom_call.1} parent=27 // pred_check
          %p535 = pneg %p162
        $region54: #{tpu_custom_call.1} parent=27 // pred_check_branch
          %537 = sbr.rel (%p535) target = $region56
        $region55: #{tpu_custom_call.1} parent=27 // pred_region
          %s539 = ssub.s32 128, 128
          %540 = vsyncadd %s517, %s539
          %s541 = sadd.s32 %s33, %s32
          %s542 = smul.addr %s541, 128
          %s543 = scalar_lea.hbm %s3, %s542
          %s545 = sshll.u32 %s520, 4
          %s546 = int_to_ptr.vmem [resolvable:$true] %s545
          %548 = dma.vmem_to_hbm [thread:$0]  %s546, 128, %s543, %s517
        $region56: #{tpu_custom_call.1} parent=27 // pred_fallthru
          _
      $region28: #{tpu_custom_call.1} parent=5 // pred_fallthru
        _
      %p549 = scmp.le.s32.totalorder 2, %s22
      // Predicated region
      $region57: #{tpu_custom_call.1} parent=5 // pred_check
        %p550 = pneg %p549
      $region58: #{tpu_custom_call.1} parent=5 // pred_check_branch
        %552 = sbr.rel (%p550) target = $region60
      $region59: #{tpu_custom_call.1} parent=5 // pred_region
        %s553 = ssub.s32 %s22, 2
        // Predicated region
        $region61: #{tpu_custom_call.1} parent=59 // pred_check
          %p554 = pneg %p140
        $region62: #{tpu_custom_call.1} parent=59 // pred_check_branch
          %556 = sbr.rel (%p554) target = $region64
        $region63: #{tpu_custom_call.1} parent=59 // pred_region
          %s557 = sand.u32 %s125, 1
          %s558 = scalar_lea.sflag [#allocation4], %s557
          %s559 = sand.u32 %s125, 1
          %s560 = smul.addr %s559, 8
          %s561 = scalar_lea.vmem [#allocation7], %s560
          %562 = dma.done %s558, 128
        $region64: #{tpu_custom_call.1} parent=59 // pred_fallthru
          _
        // Predicated region
        $region65: #{tpu_custom_call.1} parent=59 // pred_check
          %p563 = pneg %p168
        $region66: #{tpu_custom_call.1} parent=59 // pred_check_branch
          %565 = sbr.rel (%p563) target = $region68
        $region67: #{tpu_custom_call.1} parent=59 // pred_region
          %s566 = sand.u32 %s153, 1
          %s567 = scalar_lea.sflag [#allocation9], %s566
          %s568 = sand.u32 %s153, 1
          %s569 = smul.addr %s568, 8
          %s570 = scalar_lea.vmem [#allocation8], %s569
          %571 = dma.done %s567, 128
        $region68: #{tpu_custom_call.1} parent=59 // pred_fallthru
          _
      $region60: #{tpu_custom_call.1} parent=5 // pred_fallthru
        _
    $region6: #{tpu_custom_call.1} parent=1 // loop_footer
      %s26 = sadd.s32 1, %s22
    $region7: #{tpu_custom_call.1} parent=1 // loop_footer_branch
      %21 = sbr.rel target = $region3
    $region8: #{tpu_custom_call.1} parent=1 // loop_exit
      _
    %572 = vsyncpa [#allocation3], 1
    %s573 = scalar_lea.sflag [#allocation3], 1
    %574 = vsyncpa %s573, 1
    %575 = vsyncpa [#allocation6], 1
    %s576 = scalar_lea.sflag [#allocation6], 1
    %577 = vsyncpa %s576, 1
    %578 = vsyncpa [#allocation4], 1
    %s579 = scalar_lea.sflag [#allocation4], 1
    %580 = vsyncpa %s579, 1
    %581 = vsyncpa [#allocation9], 1
    %s582 = scalar_lea.sflag [#allocation9], 1
    %583 = vsyncpa %s582, 1

</llo_original>
